<compile_context>
chip_gen: v7x
topology: tpu7x:2x2x1
jax: 0.10.0
libtpu: 0.0.40
codegen_flags: <defaults>
</compile_context>

<pallas_src>
import jax
import jax.numpy as jnp
from jax.experimental import pallas as pl
from jax.experimental.pallas import tpu as pltpu


def _round_up(x, m):
    return ((x + m - 1) // m) * m


def _vpu_supports_bf16():
    """bf16 packed VALU exists on v6e / v7x; fall back to f32 on v5e & older."""
    try:
        kind = jax.devices()[0].device_kind.lower()
    except Exception:
        return False
    for old in ("v2", "v3", "v4", "v5"):
        if old in kind:
            return False
    return True


# ----------------------------------------------------------------------------
# Kernel 1: fused separable bilinear resize, Pb planes per grid step
#   out[p] = Rh @ x[p] @ Rw^T   (both matmuls inside VMEM, no HBM intermediate)
# ----------------------------------------------------------------------------
def _make_resize_kernel(pb):
    def kernel(x_ref, rh_ref, rwt_ref, o_ref):
        rh = rh_ref[...]                                   # (out_h, H) bf16
        rwt = rwt_ref[...]                                 # (W, out_w_pad) bf16
        for p in range(pb):                                # short static unroll
            tmp = jnp.dot(rh, x_ref[p],
                          preferred_element_type=jnp.float32)   # (out_h, W) f32
            o_ref[p] = jnp.dot(tmp.astype(jnp.bfloat16), rwt,
                               preferred_element_type=jnp.float32
                               ).astype(o_ref.dtype)             # (out_h, out_w_pad)
    return kernel


def _bilinear_matrix(out_size, in_size):
    # F.interpolate(..., mode='bilinear', align_corners=False) as a matrix.
    i = jnp.arange(out_size, dtype=jnp.float32)
    src = (i + 0.5) * (in_size / out_size) - 0.5
    src = jnp.clip(src, 0.0, in_size - 1)
    lo = jnp.floor(src).astype(jnp.int32)
    hi = jnp.minimum(lo + 1, in_size - 1)
    w_hi = src - lo.astype(jnp.float32)
    w_lo = 1.0 - w_hi
    m = jnp.zeros((out_size, in_size), jnp.float32)
    rows = jnp.arange(out_size)
    m = m.at[rows, lo].add(w_lo)
    m = m.at[rows, hi].add(w_hi)
    return m


_BILINEAR_CACHE = {}


def _get_resize_mats(out_h, in_h, out_w, in_w, out_w_pad):
    key = (out_h, in_h, out_w, in_w, out_w_pad)
    if key not in _BILINEAR_CACHE:
        rh = _bilinear_matrix(out_h, in_h).astype(jnp.bfloat16)       # (out_h, H)
        rwt = _bilinear_matrix(out_w, in_w).T.astype(jnp.bfloat16)    # (W, out_w)
        if out_w_pad != out_w:
            # zero columns -> lane-dense output stores; sliced off in wrapper
            rwt = jnp.pad(rwt, ((0, 0), (0, out_w_pad - out_w)))
        _BILINEAR_CACHE[key] = (rh, rwt)
    return _BILINEAR_CACHE[key]


def resize_image(img, out_h, out_w, out_dtype=jnp.float32, pb_max=8):
    """(B, C, H, W) -> (B, C, out_h, out_w), bilinear, align_corners=False.

    Pb planes are resized per grid step (both separable matmuls stay in VMEM).
    Pb is capped so the input block stays under ~4 MiB (safe under v5e's
    16 MiB scoped default and v7x's 64 MiB-per-TC physical VMEM); the plane
    grid axis is 'parallel' so v7x still shards across both TensorCores.
    """
    B, C, H, W = img.shape
    out_w_pad = _round_up(out_w, 128)
    rh, rwt = _get_resize_mats(out_h, H, out_w, W, out_w_pad)

    nplanes = B * C
    plane_bytes = H * W * 2                      # bf16 plane
    pb_fit = max(1, (4 << 20) // max(plane_bytes, 1))
    pb = max(1, min(pb_max, pb_fit, nplanes))
    npad = _round_up(nplanes, pb)

    planes = img.reshape(nplanes, H, W).astype(jnp.bfloat16)
    if npad != nplanes:
        planes = jnp.pad(planes, ((0, npad - nplanes), (0, 0), (0, 0)))

    out = pl.pallas_call(
        _make_resize_kernel(pb),
        out_shape=jax.ShapeDtypeStruct((npad, out_h, out_w_pad), out_dtype),
        grid=(npad // pb,),
        in_specs=[pl.BlockSpec((pb, H, W), lambda p: (p, 0, 0)),
                  pl.BlockSpec((out_h, H), lambda p: (0, 0)),
                  pl.BlockSpec((W, out_w_pad), lambda p: (0, 0))],
        out_specs=pl.BlockSpec((pb, out_h, out_w_pad), lambda p: (p, 0, 0)),
        compiler_params=pltpu.CompilerParams(
            dimension_semantics=("parallel",)),
    )(planes, rh, rwt)
    out = out[:nplanes, :, :out_w]
    return out.reshape(B, C, out_h, out_w)


# ----------------------------------------------------------------------------
# Kernel 2: LSeg head, transposed (channel, pixel) layout, Cf-chunked
#   featT = W^T x + b  (Cin=3 contraction as VPU broadcast FMAs; bf16 on v6e/v7x)
#   logitsT = text_feats @ featT  (MXU, bf16 in / f32 acc), accumulated per chunk
# ----------------------------------------------------------------------------
def _make_lseg_head_kernel(cf, k, cf_chunk, compute_dtype):
    n_chunks = (cf + cf_chunk - 1) // cf_chunk

    def kernel(xT_ref, wT_ref, b_ref, txt_ref, featT_ref, logitT_ref):
        x = xT_ref[...].astype(compute_dtype)              # (3, T)
        t = x.shape[1]
        logit_acc = jnp.zeros((k, t), jnp.float32)
        for c in range(n_chunks):                          # static, Cf-chunked
            c0 = c * cf_chunk
            c1 = min(cf, c0 + cf_chunk)
            w = wT_ref[c0:c1, :]                           # (cs, 3) compute_dtype
            b = b_ref[c0:c1, :]                            # (cs, 1) compute_dtype
            feat = (w[:, 0:1] * x[0:1, :]
                    + w[:, 1:2] * x[1:2, :]
                    + w[:, 2:3] * x[2:3, :]
                    + b)                                   # (cs, T), VPU only
            feat_bf = feat.astype(jnp.bfloat16)
            featT_ref[c0:c1, :] = feat_bf
            logit_acc = logit_acc + jnp.dot(
                txt_ref[:, c0:c1], feat_bf,
                preferred_element_type=jnp.float32)        # MXU
        logitT_ref[...] = logit_acc.astype(logitT_ref.dtype)

    return kernel


def lseg_head(img, w_enc, b_enc, text_feats, tile=4096, cf_chunk=256,
              compute_dtype=None):
    """img: (B, 3, Hc, Wc)  ->  (logits (B,K,Hc,Wc), feats (B,Cf,Hc,Wc)) bf16.

    Pixel axis is the lane axis (tile=4096 -> ~16 MXU/VPU-sized steps per
    480px crop, per-step overhead amortized).  Cf is chunked so the live
    (Cf, tile) intermediate never spills to VMEM.  Non-divisible P handled by
    lane-axis zero padding.
    """
    B, Cin, Hc, Wc = img.shape
    assert Cin == 3
    Cf = w_enc.shape[1]
    K = text_feats.shape[0]
    P = B * Hc * Wc
    if compute_dtype is None:
        compute_dtype = jnp.bfloat16 if _vpu_supports_bf16() else jnp.float32

    # NCHW is already channel-major: only the batch axis moves (free for B==1).
    xT = img.transpose(1, 0, 2, 3).reshape(Cin, P).astype(jnp.bfloat16)
    tile = min(tile, _round_up(P, 128))
    P_pad = _round_up(P, tile)
    if P_pad != P:
        xT = jnp.pad(xT, ((0, 0), (0, P_pad - P)))

    kernel = _make_lseg_head_kernel(Cf, K, min(cf_chunk, Cf), compute_dtype)
    featT, logitT = pl.pallas_call(
        kernel,
        out_shape=(jax.ShapeDtypeStruct((Cf, P_pad), jnp.bfloat16),
                   jax.ShapeDtypeStruct((K, P_pad), jnp.bfloat16)),
        grid=(P_pad // tile,),
        in_specs=[pl.BlockSpec((Cin, tile), lambda i: (0, i)),
                  pl.BlockSpec((Cf, Cin), lambda i: (0, 0)),
                  pl.BlockSpec((Cf, 1), lambda i: (0, 0)),
                  pl.BlockSpec((K, Cf), lambda i: (0, 0))],
        out_specs=(pl.BlockSpec((Cf, tile), lambda i: (0, i)),
                   pl.BlockSpec((K, tile), lambda i: (0, i))),
        compiler_params=pltpu.CompilerParams(
            dimension_semantics=("parallel",)),
    )(xT, w_enc.T.astype(compute_dtype),
      b_enc.reshape(Cf, 1).astype(compute_dtype),
      text_feats.astype(jnp.bfloat16))

    featT = featT[:, :P].reshape(Cf, B, Hc, Wc).transpose(1, 0, 2, 3)
    logitT = logitT[:, :P].reshape(K, B, Hc, Wc).transpose(1, 0, 2, 3)
    return logitT, featT


# ----------------------------------------------------------------------------
# Kernel 3: channel-argmax (seg_mask), lane-dense: reduce over sublane axis K
# ----------------------------------------------------------------------------
def _argmax_ch_kernel(x_ref, o_ref):
    x = x_ref[...]                                       # (K, T) f32
    k = x.shape[0]
    mx = jnp.max(x, axis=0, keepdims=True)               # (1, T)
    ids = jax.lax.broadcasted_iota(jnp.int32, x.shape, 0)
    idx = jnp.min(jnp.where(x == mx, ids, jnp.int32(k)), axis=0, keepdims=True)
    # clamp keeps indices in range even for degenerate (e.g. all-NaN) columns
    o_ref[...] = jnp.minimum(idx, k - 1).astype(jnp.int32)


def channel_argmax(x, tile=4096):
    """x: (B, K, h, w) f32 -> (B, 1, h, w) int32 (first-max index over channel)."""
    B, K, h, w = x.shape
    Npix = h * w
    tile = min(tile, _round_up(Npix, 128))
    Npad = _round_up(Npix, tile)
    flat = x.reshape(B, K, Npix).astype(jnp.float32)
    if Npad != Npix:
        flat = jnp.pad(flat, ((0, 0), (0, 0), (0, Npad - Npix)))
    out = pl.pallas_call(
        _argmax_ch_kernel,
        out_shape=jax.ShapeDtypeStruct((B, 1, Npad), jnp.int32),
        grid=(B, Npad // tile),
        in_specs=[pl.BlockSpec((None, K, tile), lambda b, i: (b, 0, i))],
        out_specs=pl.BlockSpec((None, 1, tile), lambda b, i: (b, 0, i)),
        compiler_params=pltpu.CompilerParams(
            dimension_semantics=("parallel", "parallel")),
    )(flat)
    return out[:, :, :Npix].reshape(B, 1, h, w)


# ----------------------------------------------------------------------------
# Plain-JAX glue (crop / pad) — faithful to the PyTorch helpers
# ----------------------------------------------------------------------------
def crop_image(img, h0, h1, w0, w1):
    return img[:, :, h0:h1, w0:w1]


def pad_image(img, mean, std, crop_size):
    # Kept for interface fidelity; not on the hot path anymore (the per-pixel
    # synthetic encoder makes pad -> encode -> crop equivalent to encode).
    b, c, h, w = img.shape
    assert c == 3
    padh = crop_size - h if h < crop_size else 0
    padw = crop_size - w if w < crop_size else 0
    pad_val = -mean[0] / std[0]
    img_pad = jnp.pad(img, ((0, 0), (0, 0), (0, padh), (0, padw)),
                      constant_values=pad_val)
    assert img_pad.shape[2] >= crop_size and img_pad.shape[3] >= crop_size
    return img_pad


# ----------------------------------------------------------------------------
# The module
# ----------------------------------------------------------------------------
class VisionLanguageEncoderPallas:
    """2D (Spatial/Pixel-aligned/local) image encoder — Pallas TPU version."""

    def __init__(self, params, vl_model_cropsize, freeze_vlseg_model=True,
                 return_only_feat=False, vlseg_model_name="lseg"):
        self.w_enc = params["w_enc"]            # (3, Cf)
        self.b_enc = params["b_enc"]            # (Cf,)
        self.text_feats = params["text_feats"]  # (num_classes, Cf)
        self.vl_model_cropsize = vl_model_cropsize
        self.freeze_vlseg_model = freeze_vlseg_model
        self.return_only_feat = return_only_feat
        self.vlseg_model_name = vlseg_model_name

    # synthetic LSegFeatNet.__call__(img) -> (out, image_feats, text_feats)
    def _vlseg_encoder(self, img):
        out, image_feats = lseg_head(img, self.w_enc, self.b_enc,
                                     self.text_feats)
        return out, image_feats, self.text_feats

    def single_crop_forward(self, image, crop_size):
        batch, _, h, w = image.shape
        assert w > h
        height = int(crop_size * h / w)
        # encoder input kept in bf16 (amp.autocast analogue)
        cur_img = resize_image(image, height, crop_size, out_dtype=jnp.bfloat16)
        # pad_image + (head on padded rows) + crop_image collapsed: the padded
        # rows are discarded by the crop and never influence kept pixels for a
        # per-pixel encoder, so we run the head directly on cur_img.
        # TODO(synk): the real LSegFeatNet (ViT backbone) mixes padded pixels,
        # so the checkpointed model would still require pad_image here.
        out, image_feats, text_feats = self._vlseg_encoder(cur_img)
        out = resize_image(crop_image(out, 0, height, 0, crop_size),
                           h // 8, w // 8)                       # f32 (argmax ties)
        image_feats = resize_image(
            crop_image(image_feats, 0, height, 0, crop_size),
            h // 8, w // 8, out_dtype=jnp.bfloat16)              # bf16 writeback
        return out, image_feats, text_feats

    def forward(self, x, vision_feat):
        B, N, C, H, W = vision_feat.shape
        vision_feat = vision_feat.reshape(B * N, C, H, W)  # unused downstream (faithful to reference)

        # freeze_all path: encoder is frozen; amp.autocast approximated by bf16/f32
        seg_logits, vl_feat, text_feat = self.single_crop_forward(
            x, self.vl_model_cropsize)

        # seg_mask = torch.max(seg_logits, 1)[1].unsqueeze(1)
        seg_mask = channel_argmax(seg_logits)

        if self.return_only_feat:
            # NOTE: reference code returns an undefined `fused_feat` here.
            raise NotImplementedError()
        return {"vl_feat": vl_feat, "text_feat": text_feat,
                "seg_logits": seg_logits, "seg_mask": seg_mask}


# ----------------------------------------------------------------------------
# Demo
# ----------------------------------------------------------------------------
if __name__ == "__main__":
    key = jax.random.PRNGKey(0)
    k_x, k_vf, k_w, k_b, k_t = jax.random.split(key, 5)

    # small shapes: image must have W > H; crop_size chosen so h//8, w//8 > 0
    B, H, W = 1, 32, 64
    crop_size = 32
    Cf, num_classes = 16, 8

    x = jax.random.uniform(k_x, (B, 3, H, W), jnp.float32, -1.0, 1.0)
    vision_feat = jax.random.normal(k_vf, (B, 2, 4, 8, 8), jnp.float32)

    params = {
        "w_enc": 0.1 * jax.random.normal(k_w, (3, Cf), jnp.float32),
        "b_enc": 0.01 * jax.random.normal(k_b, (Cf,), jnp.float32),
        "text_feats": jax.random.normal(k_t, (num_classes, Cf), jnp.float32),
    }

    enc = VisionLanguageEncoderPallas(
        params, vl_model_cropsize=crop_size, freeze_vlseg_model=True,
        return_only_feat=False, vlseg_model_name="lseg")

    out = enc.forward(x, vision_feat)
    out = jax.block_until_ready(out)

    assert out["vl_feat"].shape == (B, Cf, H // 8, W // 8)
    assert out["seg_logits"].shape == (B, num_classes, H // 8, W // 8)
    assert out["seg_mask"].shape == (B, 1, H // 8, W // 8)
    assert out["text_feat"].shape == (num_classes, Cf)
    assert out["seg_mask"].dtype == jnp.int32

    print("KERNEL_OK")
</pallas_src>

<mosaic_0001>
module attributes {stable_mosaic.version = 11 : i64} {
  func.func @kernel(%arg0: i32, %arg1: memref<3x32x64xbf16, #tpu.memory_space<vmem>>, %arg2: memref<16x32xbf16, #tpu.memory_space<vmem>>, %arg3: memref<64x128xbf16, #tpu.memory_space<vmem>>, %arg4: memref<3x16x128xbf16, #tpu.memory_space<vmem>>) attributes {dimension_semantics = [#tpu.dimension_semantics<parallel>], iteration_bounds = array<i64: 1>, scalar_prefetch = 0 : i64, scratch_operands = 0 : i64, tpu.core_type = #tpu.core_type<tc>, window_params = [{transform_indices = @transform_0, window_bounds = array<i64: 3, 32, 64>}, {pipeline_mode = #tpu.pipeline_mode<synchronous>, transform_indices = @transform_1, window_bounds = array<i64: 16, 32>}, {pipeline_mode = #tpu.pipeline_mode<synchronous>, transform_indices = @transform_2, window_bounds = array<i64: 64, 128>}, {transform_indices = @transform_3, window_bounds = array<i64: 3, 16, 128>}]} {
    %c0 = arith.constant 0 : index
    %c0_0 = arith.constant 0 : index
    %0 = vector.load %arg2[%c0, %c0_0] : memref<16x32xbf16, #tpu.memory_space<vmem>>, vector<16x32xbf16>
    %c0_1 = arith.constant 0 : index
    %c0_2 = arith.constant 0 : index
    %1 = vector.load %arg3[%c0_1, %c0_2] : memref<64x128xbf16, #tpu.memory_space<vmem>>, vector<64x128xbf16>
    %c0_3 = arith.constant 0 : index
    %c0_4 = arith.constant 0 : index
    %c0_5 = arith.constant 0 : index
    %2 = vector.load %arg1[%c0_3, %c0_4, %c0_5] : memref<3x32x64xbf16, #tpu.memory_space<vmem>>, vector<1x32x64xbf16>
    %3 = vector.shape_cast %2 : vector<1x32x64xbf16> to vector<32x64xbf16>
    %cst = arith.constant dense<0.000000e+00> : vector<16x64xf32>
    %4 = tpu.matmul %0, %3, %cst {dimension_numbers = #tpu.dot_dimension_numbers<[1], [0], [0], [1], [0, 0, 1, 1], [], []>} : vector<16x32xbf16>, vector<32x64xbf16>, vector<16x64xf32> -> vector<16x64xf32>
    %5 = arith.truncf %4 : vector<16x64xf32> to vector<16x64xbf16>
    %cst_6 = arith.constant dense<0.000000e+00> : vector<16x128xf32>
    %6 = tpu.matmul %5, %1, %cst_6 {dimension_numbers = #tpu.dot_dimension_numbers<[1], [0], [0], [1], [0, 0, 1, 1], [], []>} : vector<16x64xbf16>, vector<64x128xbf16>, vector<16x128xf32> -> vector<16x128xf32>
    %7 = arith.truncf %6 : vector<16x128xf32> to vector<16x128xbf16>
    %c0_7 = arith.constant 0 : index
    %c0_8 = arith.constant 0 : index
    %c0_9 = arith.constant 0 : index
    %8 = vector.load %arg4[%c0_7, %c0_8, %c0_9] : memref<3x16x128xbf16, #tpu.memory_space<vmem>>, vector<1x16x128xbf16>
    %9 = vector.shape_cast %8 : vector<1x16x128xbf16> to vector<16x128xbf16>
    %10 = vector.shape_cast %7 : vector<16x128xbf16> to vector<1x16x128xbf16>
    tpu.vector_store %arg4[%c0_7, %c0_8, %c0_9], %10 {strides = array<i32>} : memref<3x16x128xbf16, #tpu.memory_space<vmem>>, vector<1x16x128xbf16>,
    %c1 = arith.constant 1 : index
    %c0_10 = arith.constant 0 : index
    %c0_11 = arith.constant 0 : index
    %11 = vector.load %arg1[%c1, %c0_10, %c0_11] : memref<3x32x64xbf16, #tpu.memory_space<vmem>>, vector<1x32x64xbf16>
    %12 = vector.shape_cast %11 : vector<1x32x64xbf16> to vector<32x64xbf16>
    %cst_12 = arith.constant dense<0.000000e+00> : vector<16x64xf32>
    %13 = tpu.matmul %0, %12, %cst_12 {dimension_numbers = #tpu.dot_dimension_numbers<[1], [0], [0], [1], [0, 0, 1, 1], [], []>} : vector<16x32xbf16>, vector<32x64xbf16>, vector<16x64xf32> -> vector<16x64xf32>
    %14 = arith.truncf %13 : vector<16x64xf32> to vector<16x64xbf16>
    %cst_13 = arith.constant dense<0.000000e+00> : vector<16x128xf32>
    %15 = tpu.matmul %14, %1, %cst_13 {dimension_numbers = #tpu.dot_dimension_numbers<[1], [0], [0], [1], [0, 0, 1, 1], [], []>} : vector<16x64xbf16>, vector<64x128xbf16>, vector<16x128xf32> -> vector<16x128xf32>
    %16 = arith.truncf %15 : vector<16x128xf32> to vector<16x128xbf16>
    %c1_14 = arith.constant 1 : index
    %c0_15 = arith.constant 0 : index
    %c0_16 = arith.constant 0 : index
    %17 = vector.load %arg4[%c1_14, %c0_15, %c0_16] : memref<3x16x128xbf16, #tpu.memory_space<vmem>>, vector<1x16x128xbf16>
    %18 = vector.shape_cast %17 : vector<1x16x128xbf16> to vector<16x128xbf16>
    %19 = vector.shape_cast %16 : vector<16x128xbf16> to vector<1x16x128xbf16>
    tpu.vector_store %arg4[%c1_14, %c0_15, %c0_16], %19 {strides = array<i32>} : memref<3x16x128xbf16, #tpu.memory_space<vmem>>, vector<1x16x128xbf16>,
    %c2 = arith.constant 2 : index
    %c0_17 = arith.constant 0 : index
    %c0_18 = arith.constant 0 : index
    %20 = vector.load %arg1[%c2, %c0_17, %c0_18] : memref<3x32x64xbf16, #tpu.memory_space<vmem>>, vector<1x32x64xbf16>
    %21 = vector.shape_cast %20 : vector<1x32x64xbf16> to vector<32x64xbf16>
    %cst_19 = arith.constant dense<0.000000e+00> : vector<16x64xf32>
    %22 = tpu.matmul %0, %21, %cst_19 {dimension_numbers = #tpu.dot_dimension_numbers<[1], [0], [0], [1], [0, 0, 1, 1], [], []>} : vector<16x32xbf16>, vector<32x64xbf16>, vector<16x64xf32> -> vector<16x64xf32>
    %23 = arith.truncf %22 : vector<16x64xf32> to vector<16x64xbf16>
    %cst_20 = arith.constant dense<0.000000e+00> : vector<16x128xf32>
    %24 = tpu.matmul %23, %1, %cst_20 {dimension_numbers = #tpu.dot_dimension_numbers<[1], [0], [0], [1], [0, 0, 1, 1], [], []>} : vector<16x64xbf16>, vector<64x128xbf16>, vector<16x128xf32> -> vector<16x128xf32>
    %25 = arith.truncf %24 : vector<16x128xf32> to vector<16x128xbf16>
    %c2_21 = arith.constant 2 : index
    %c0_22 = arith.constant 0 : index
    %c0_23 = arith.constant 0 : index
    %26 = vector.load %arg4[%c2_21, %c0_22, %c0_23] : memref<3x16x128xbf16, #tpu.memory_space<vmem>>, vector<1x16x128xbf16>
    %27 = vector.shape_cast %26 : vector<1x16x128xbf16> to vector<16x128xbf16>
    %28 = vector.shape_cast %25 : vector<16x128xbf16> to vector<1x16x128xbf16>
    tpu.vector_store %arg4[%c2_21, %c0_22, %c0_23], %28 {strides = array<i32>} : memref<3x16x128xbf16, #tpu.memory_space<vmem>>, vector<1x16x128xbf16>,
    return
  }
  func.func @transform_0(%arg0: i32) -> (i32, i32, i32) {
    %c0_i32 = arith.constant 0 : i32
    %c0_i32_0 = arith.constant 0 : i32
    %c0_i32_1 = arith.constant 0 : i32
    return %arg0, %c0_i32, %c0_i32_0 : i32, i32, i32
  }
  func.func @transform_1(%arg0: i32) -> (i32, i32) {
    %c0_i32 = arith.constant 0 : i32
    %c0_i32_0 = arith.constant 0 : i32
    %c0_i32_1 = arith.constant 0 : i32
    return %c0_i32, %c0_i32_0 : i32, i32
  }
  func.func @transform_2(%arg0: i32) -> (i32, i32) {
    %c0_i32 = arith.constant 0 : i32
    %c0_i32_0 = arith.constant 0 : i32
    %c0_i32_1 = arith.constant 0 : i32
    return %c0_i32, %c0_i32_0 : i32, i32
  }
  func.func @transform_3(%arg0: i32) -> (i32, i32, i32) {
    %c0_i32 = arith.constant 0 : i32
    %c0_i32_0 = arith.constant 0 : i32
    %c0_i32_1 = arith.constant 0 : i32
    return %arg0, %c0_i32, %c0_i32_0 : i32, i32, i32
  }
}

</mosaic_0001>

<llo_original>
// kernel: tpu_custom_call.1
$region0: #{tpu_custom_call.1}
  #allocation0 [shape = 'u32[]', space=smem, size = 0x4, offset = 0x4, fixed_abs, tag = 'smem constant byte address 0x4 - core index']
  #allocation1 [shape = 'u32[144,128]{1,0:T(1,128)}', space=vmem, size = 0x12000, scoped, tag = 'internal scratch']
  %s0 = inlined_call_operand.hbm [shape: bf16[3,32,64], index: 0, kind: input, shape index: {}]
  %s1 = inlined_call_operand.hbm [shape: bf16[16,32], index: 1, kind: input, shape index: {}]
  %s2 = inlined_call_operand.hbm [shape: bf16[64,128], index: 2, kind: input, shape index: {}]
  %s3 = inlined_call_operand.hbm [shape: bf16[3,16,128], index: 3, kind: output, shape index: {}]
  %s4 = sld [smem:[#allocation0]]
  $region34: #{tpu_custom_call.1} parent=0
    _
  %s6 = ssub.s32 1, %s4
  %s7 = scalar_select 0, %s6, %s4
  $region1: #{tpu_custom_call.1} parent=0
    #allocation2 [shape = 'u8[24576]{0}', space=vmem, size = 0x6000, scoped, tag = 'input window, operand 0, single buffered']
    #allocation3 [shape = 's32[1]{0}', space=sflag, size = 0x4, scoped, tag = 'scoped memory for tpu_custom_call.1']
    #allocation4 [shape = 's32[1]{0}', space=sflag, size = 0x4, scoped, tag = 'scoped memory for tpu_custom_call.1']
    #allocation5 [shape = 'u8[4096]{0}', space=vmem, size = 0x1000, scoped, tag = 'input window, operand 1, single buffered']
    #allocation6 [shape = 's32[1]{0}', space=sflag, size = 0x4, scoped, tag = 'scoped memory for tpu_custom_call.1']
    #allocation7 [shape = 'u8[16384]{0}', space=vmem, size = 0x4000, scoped, tag = 'input window, operand 2, single buffered']
    #allocation8 [shape = 'u8[12288]{0}', space=vmem, size = 0x3000, scoped, tag = 'output window, operand 0, single buffered']
    %8 = vsyncpa [#allocation3], 0
    %9 = vsyncpa [#allocation6], 0
    %10 = vsyncpa [#allocation4], 0
    // Predicated region
    $region2: #{tpu_custom_call.1} parent=1 // pred_check
      _
    $region3: #{tpu_custom_call.1} parent=1 // pred_check_branch
      %12 = sbr.rel (0) target = $region5
    $region4: #{tpu_custom_call.1} parent=1 // pred_region
      %s14 = ssub.s32 768, 768
      %15 = vsyncadd [#allocation3], %s14
      %s16 = sshll.u32 [#allocation2], 4
      %s17 = int_to_ptr.vmem [resolvable:$true] %s16
      %22 = dma.hbm_to_vmem [thread:$0]  %s0, 768, %s17, [#allocation3], 64, 64, 4
    $region5: #{tpu_custom_call.1} parent=1 // pred_fallthru
      _
    // Predicated region
    $region6: #{tpu_custom_call.1} parent=1 // pred_check
      _
    $region7: #{tpu_custom_call.1} parent=1 // pred_check_branch
      %24 = sbr.rel (0) target = $region9
    $region8: #{tpu_custom_call.1} parent=1 // pred_region
      %s26 = ssub.s32 128, 128
      %27 = vsyncadd [#allocation6], %s26
      %s28 = sshll.u32 [#allocation5], 4
      %s29 = int_to_ptr.vmem [resolvable:$true] %s28
      %34 = dma.hbm_to_vmem [thread:$0]  %s1, 128, %s29, [#allocation6], 64, 64, 4
    $region9: #{tpu_custom_call.1} parent=1 // pred_fallthru
      _
    // Predicated region
    $region10: #{tpu_custom_call.1} parent=1 // pred_check
      _
    $region11: #{tpu_custom_call.1} parent=1 // pred_check_branch
      %36 = sbr.rel (0) target = $region13
    $region12: #{tpu_custom_call.1} parent=1 // pred_region
      %s38 = ssub.s32 512, 512
      %39 = vsyncadd [#allocation6], %s38
      %s40 = sshll.u32 [#allocation7], 4
      %s41 = int_to_ptr.vmem [resolvable:$true] %s40
      %46 = dma.hbm_to_vmem [thread:$0]  %s2, 512, %s41, [#allocation6], 64, 64, 4
    $region13: #{tpu_custom_call.1} parent=1 // pred_fallthru
      _
    // Predicated region
    $region14: #{tpu_custom_call.1} parent=1 // pred_check
      _
    $region15: #{tpu_custom_call.1} parent=1 // pred_check_branch
      %48 = sbr.rel (0) target = $region17
    $region16: #{tpu_custom_call.1} parent=1 // pred_region
      %49 = dma.done [#allocation3], 768
    $region17: #{tpu_custom_call.1} parent=1 // pred_fallthru
      _
    // Predicated region
    $region18: #{tpu_custom_call.1} parent=1 // pred_check
      _
    $region19: #{tpu_custom_call.1} parent=1 // pred_check_branch
      %51 = sbr.rel (0) target = $region21
    $region20: #{tpu_custom_call.1} parent=1 // pred_region
      %52 = dma.done [#allocation6], 128
    $region21: #{tpu_custom_call.1} parent=1 // pred_fallthru
      _
    // Predicated region
    $region22: #{tpu_custom_call.1} parent=1 // pred_check
      _
    $region23: #{tpu_custom_call.1} parent=1 // pred_check_branch
      %54 = sbr.rel (0) target = $region25
    $region24: #{tpu_custom_call.1} parent=1 // pred_region
      %55 = dma.done [#allocation6], 512
    $region25: #{tpu_custom_call.1} parent=1 // pred_fallthru
      _
    %v57 = vld [vmem:[#allocation5] sm:$0xf]
    %v58 = vld [vmem:[#allocation5 + $0x4] sm:$0xf]
    %v59 = vld [vmem:[#allocation7] sm:$0xf]
    %v60 = vld [vmem:[#allocation7 + $0x4] sm:$0xf]
    %v61 = vld [vmem:[#allocation7 + $0x8] sm:$0xf]
    %v62 = vld [vmem:[#allocation7 + $0xc] sm:$0xf]
    %v63 = vld [vmem:[#allocation7 + $0x10] sm:$0xf]
    %v64 = vld [vmem:[#allocation7 + $0x14] sm:$0xf]
    %v65 = vld [vmem:[#allocation7 + $0x18] sm:$0xf]
    %v66 = vld [vmem:[#allocation7 + $0x1c] sm:$0xf]
    %v67 = vld [vmem:[#allocation2] sm:$0xf]
    %v68 = vld [vmem:[#allocation2 + $0x4] sm:$0xf]
    %v69 = vld [vmem:[#allocation2 + $0x8] sm:$0xf]
    %v70 = vld [vmem:[#allocation2 + $0xc] sm:$0xf]
    %v73 = vunpack.c.l.b16 %v57
    %v74 = vunpack.c.l.b16 %v58
    %v75 = vpack.c.b16 %v74, %v73
    %v80 = vunpack.c.l.b16 %v67
    %v81 = vunpack.c.l.b16 %v68
    %v82 = vunpack.c.l.b16 %v69
    %v83 = vunpack.c.l.b16 %v70
    %v84 = vpack.c.b16 %v81, %v80
    %v85 = vpack.c.b16 %v83, %v82
    %vm88 = vcmask 261120
    %v90 = vsel %vm88, %v75, 0
    %92 = vmatprep.subr.bf16.mxu0 0
    %93 = vmatpush1.bf16.msra.mxu0 %v84
    %94 = vmatprep.subr.bf16.mxu0 0
    %95 = vmatpush1.bf16.msra.mxu0 %v85
    %96 = vmatprep.subr.bf16.mxu0 0
    %97 = vmatpush1.bf16.msra.mxu0 0
    %98 = vmatprep.subr.bf16.mxu0 0
    %99 = vmatpush1.bf16.msra.mxu0 0
    %100 = vmatprep.subr.bf16.mxu0 0
    %101 = vmatpush1.bf16.msra.mxu0 0
    %102 = vmatprep.subr.bf16.mxu0 0
    %103 = vmatpush1.bf16.msra.mxu0 0
    %104 = vmatprep.subr.bf16.mxu0 0
    %105 = vmatpush1.bf16.msra.mxu0 0
    %106 = vmatprep.subr.bf16.mxu0 0
    %107 = vmatpush1.bf16.msra.mxu0 0
    %108 = vmatprep.subr.bf16.mxu0 0
    %109 = vmatpush1.bf16.msra.mxu0 0
    %110 = vmatprep.subr.bf16.mxu0 0
    %111 = vmatpush1.bf16.msra.mxu0 0
    %112 = vmatprep.subr.bf16.mxu0 0
    %113 = vmatpush1.bf16.msra.mxu0 0
    %114 = vmatprep.subr.bf16.mxu0 0
    %115 = vmatpush1.bf16.msra.mxu0 0
    %116 = vmatprep.subr.bf16.mxu0 0
    %117 = vmatpush1.bf16.msra.mxu0 0
    %118 = vmatprep.subr.bf16.mxu0 0
    %119 = vmatpush1.bf16.msra.mxu0 0
    %120 = vmatprep.subr.bf16.mxu0 0
    %121 = vmatpush1.bf16.msra.mxu0 0
    %122 = vmatprep.subr.bf16.mxu0 0
    %123 = vmatpush1.bf16.msra.mxu0 0
    %124 = vmatprep.mubr.bf16.mxu0 0
    %125 = vmatmul.mubr.bf16.gmra.mrb[0].mxu0 %v90
    %v126 = vpop.f32.mrb[0].mxu0
    %v127 = vadd.f32 0.0, %v126
    %v128 = vpop.f32.mrb[0].mxu0
    %v129 = vpop.f32.mrb[0].mxu0
    %v130 = vadd.f32 0.0, %v129
    %v131 = vpop.f32.mrb[0].mxu0
    %132 = vdwg.mxu0
    %v133 = vpack.c.bf16 %v130, %v127
    %v142 = vunpack.c.l.b16 %v59
    %v143 = vunpack.c.l.b16 %v60
    %v144 = vunpack.c.l.b16 %v61
    %v145 = vunpack.c.l.b16 %v62
    %v146 = vunpack.c.l.b16 %v63
    %v147 = vunpack.c.l.b16 %v64
    %v148 = vunpack.c.l.b16 %v65
    %v149 = vunpack.c.l.b16 %v66
    %v150 = vpack.c.b16 %v143, %v142
    %v151 = vpack.c.b16 %v145, %v144
    %v152 = vpack.c.b16 %v147, %v146
    %v153 = vpack.c.b16 %v149, %v148
    %vm158 = vcmask 523264
    %v160 = vsel %vm158, %v133, 0
    %162 = vmatprep.subr.bf16.mxu0 0
    %163 = vmatpush1.bf16.msra.mxu0 %v150
    %164 = vmatprep.subr.bf16.mxu0 0
    %165 = vmatpush1.bf16.msra.mxu0 %v151
    %166 = vmatprep.subr.bf16.mxu0 0
    %167 = vmatpush1.bf16.msra.mxu0 %v152
    %168 = vmatprep.subr.bf16.mxu0 0
    %169 = vmatpush1.bf16.msra.mxu0 %v153
    %170 = vmatprep.subr.bf16.mxu0 0
    %171 = vmatpush1.bf16.msra.mxu0 0
    %172 = vmatprep.subr.bf16.mxu0 0
    %173 = vmatpush1.bf16.msra.mxu0 0
    %174 = vmatprep.subr.bf16.mxu0 0
    %175 = vmatpush1.bf16.msra.mxu0 0
    %176 = vmatprep.subr.bf16.mxu0 0
    %177 = vmatpush1.bf16.msra.mxu0 0
    %178 = vmatprep.subr.bf16.mxu0 0
    %179 = vmatpush1.bf16.msra.mxu0 0
    %180 = vmatprep.subr.bf16.mxu0 0
    %181 = vmatpush1.bf16.msra.mxu0 0
    %182 = vmatprep.subr.bf16.mxu0 0
    %183 = vmatpush1.bf16.msra.mxu0 0
    %184 = vmatprep.subr.bf16.mxu0 0
    %185 = vmatpush1.bf16.msra.mxu0 0
    %186 = vmatprep.subr.bf16.mxu0 0
    %187 = vmatpush1.bf16.msra.mxu0 0
    %188 = vmatprep.subr.bf16.mxu0 0
    %189 = vmatpush1.bf16.msra.mxu0 0
    %190 = vmatprep.subr.bf16.mxu0 0
    %191 = vmatpush1.bf16.msra.mxu0 0
    %192 = vmatprep.subr.bf16.mxu0 0
    %193 = vmatpush1.bf16.msra.mxu0 0
    %194 = vmatprep.mubr.bf16.mxu0 0
    %195 = vmatmul.mubr.bf16.gmra.mrb[0].mxu0 %v160
    %v196 = vpop.f32.mrb[0].mxu0
    %v197 = vadd.f32 0.0, %v196
    %v198 = vpop.f32.mrb[0].mxu0
    %v199 = vpop.f32.mrb[0].mxu0
    %v200 = vadd.f32 0.0, %v199
    %v201 = vpop.f32.mrb[0].mxu0
    %202 = vdwg.mxu0
    %v203 = vpack.c.bf16 %v200, %v197
    %v205 = vunpack.c.l.b16 %v203
    %v206 = vunpack.c.h.b16 %v203
    %v207 = vpack.c.b16 %v205, %v205
    %v208 = vpack.c.b16 %v206, %v206
    %211 = vst [vmem:[#allocation8] sm:$0xf] %v207
    %212 = vst [vmem:[#allocation8 + $0x4] sm:$0xf] %v208
    %s213 = scalar_lea.vmem [#allocation2], 16
    %v214 = vld [vmem:[%s213] sm:$0xf]
    %v215 = vld [vmem:[%s213 + $0x4] sm:$0xf]
    %v216 = vld [vmem:[%s213 + $0x8] sm:$0xf]
    %v217 = vld [vmem:[%s213 + $0xc] sm:$0xf]
    %v222 = vunpack.c.l.b16 %v214
    %v223 = vunpack.c.l.b16 %v215
    %v224 = vunpack.c.l.b16 %v216
    %v225 = vunpack.c.l.b16 %v217
    %v226 = vpack.c.b16 %v223, %v222
    %v227 = vpack.c.b16 %v225, %v224
    %230 = vmatprep.subr.bf16.mxu0 0
    %231 = vmatpush1.bf16.msra.mxu0 %v226
    %232 = vmatprep.subr.bf16.mxu0 0
    %233 = vmatpush1.bf16.msra.mxu0 %v227
    %234 = vmatprep.subr.bf16.mxu0 0
    %235 = vmatpush1.bf16.msra.mxu0 0
    %236 = vmatprep.subr.bf16.mxu0 0
    %237 = vmatpush1.bf16.msra.mxu0 0
    %238 = vmatprep.subr.bf16.mxu0 0
    %239 = vmatpush1.bf16.msra.mxu0 0
    %240 = vmatprep.subr.bf16.mxu0 0
    %241 = vmatpush1.bf16.msra.mxu0 0
    %242 = vmatprep.subr.bf16.mxu0 0
    %243 = vmatpush1.bf16.msra.mxu0 0
    %244 = vmatprep.subr.bf16.mxu0 0
    %245 = vmatpush1.bf16.msra.mxu0 0
    %246 = vmatprep.subr.bf16.mxu0 0
    %247 = vmatpush1.bf16.msra.mxu0 0
    %248 = vmatprep.subr.bf16.mxu0 0
    %249 = vmatpush1.bf16.msra.mxu0 0
    %250 = vmatprep.subr.bf16.mxu0 0
    %251 = vmatpush1.bf16.msra.mxu0 0
    %252 = vmatprep.subr.bf16.mxu0 0
    %253 = vmatpush1.bf16.msra.mxu0 0
    %254 = vmatprep.subr.bf16.mxu0 0
    %255 = vmatpush1.bf16.msra.mxu0 0
    %256 = vmatprep.subr.bf16.mxu0 0
    %257 = vmatpush1.bf16.msra.mxu0 0
    %258 = vmatprep.subr.bf16.mxu0 0
    %259 = vmatpush1.bf16.msra.mxu0 0
    %260 = vmatprep.subr.bf16.mxu0 0
    %261 = vmatpush1.bf16.msra.mxu0 0
    %262 = vmatprep.mubr.bf16.mxu0 0
    %263 = vmatmul.mubr.bf16.gmra.mrb[0].mxu0 %v90
    %v264 = vpop.f32.mrb[0].mxu0
    %v265 = vadd.f32 0.0, %v264
    %v266 = vpop.f32.mrb[0].mxu0
    %v267 = vpop.f32.mrb[0].mxu0
    %v268 = vadd.f32 0.0, %v267
    %v269 = vpop.f32.mrb[0].mxu0
    %270 = vdwg.mxu0
    %v271 = vpack.c.bf16 %v268, %v265
    %v273 = vsel %vm158, %v271, 0
    %275 = vmatprep.subr.bf16.mxu0 0
    %276 = vmatpush1.bf16.msra.mxu0 %v150
    %277 = vmatprep.subr.bf16.mxu0 0
    %278 = vmatpush1.bf16.msra.mxu0 %v151
    %279 = vmatprep.subr.bf16.mxu0 0
    %280 = vmatpush1.bf16.msra.mxu0 %v152
    %281 = vmatprep.subr.bf16.mxu0 0
    %282 = vmatpush1.bf16.msra.mxu0 %v153
    %283 = vmatprep.subr.bf16.mxu0 0
    %284 = vmatpush1.bf16.msra.mxu0 0
    %285 = vmatprep.subr.bf16.mxu0 0
    %286 = vmatpush1.bf16.msra.mxu0 0
    %287 = vmatprep.subr.bf16.mxu0 0
    %288 = vmatpush1.bf16.msra.mxu0 0
    %289 = vmatprep.subr.bf16.mxu0 0
    %290 = vmatpush1.bf16.msra.mxu0 0
    %291 = vmatprep.subr.bf16.mxu0 0
    %292 = vmatpush1.bf16.msra.mxu0 0
    %293 = vmatprep.subr.bf16.mxu0 0
    %294 = vmatpush1.bf16.msra.mxu0 0
    %295 = vmatprep.subr.bf16.mxu0 0
    %296 = vmatpush1.bf16.msra.mxu0 0
    %297 = vmatprep.subr.bf16.mxu0 0
    %298 = vmatpush1.bf16.msra.mxu0 0
    %299 = vmatprep.subr.bf16.mxu0 0
    %300 = vmatpush1.bf16.msra.mxu0 0
    %301 = vmatprep.subr.bf16.mxu0 0
    %302 = vmatpush1.bf16.msra.mxu0 0
    %303 = vmatprep.subr.bf16.mxu0 0
    %304 = vmatpush1.bf16.msra.mxu0 0
    %305 = vmatprep.subr.bf16.mxu0 0
    %306 = vmatpush1.bf16.msra.mxu0 0
    %307 = vmatprep.mubr.bf16.mxu0 0
    %308 = vmatmul.mubr.bf16.gmra.mrb[0].mxu0 %v273
    %v309 = vpop.f32.mrb[0].mxu0
    %v310 = vadd.f32 0.0, %v309
    %v311 = vpop.f32.mrb[0].mxu0
    %v312 = vpop.f32.mrb[0].mxu0
    %v313 = vadd.f32 0.0, %v312
    %v314 = vpop.f32.mrb[0].mxu0
    %315 = vdwg.mxu0
    %v316 = vpack.c.bf16 %v313, %v310
    %v318 = vunpack.c.l.b16 %v316
    %v319 = vunpack.c.h.b16 %v316
    %v320 = vpack.c.b16 %v318, %v318
    %v321 = vpack.c.b16 %v319, %v319
    %s324 = scalar_lea.vmem [#allocation8], 8
    %325 = vst [vmem:[%s324] sm:$0xf] %v320
    %326 = vst [vmem:[%s324 + $0x4] sm:$0xf] %v321
    %s327 = scalar_lea.vmem [#allocation2], 32
    %v328 = vld [vmem:[%s327] sm:$0xf]
    %v329 = vld [vmem:[%s327 + $0x4] sm:$0xf]
    %v330 = vld [vmem:[%s327 + $0x8] sm:$0xf]
    %v331 = vld [vmem:[%s327 + $0xc] sm:$0xf]
    %v336 = vunpack.c.l.b16 %v328
    %v337 = vunpack.c.l.b16 %v329
    %v338 = vunpack.c.l.b16 %v330
    %v339 = vunpack.c.l.b16 %v331
    %v340 = vpack.c.b16 %v337, %v336
    %v341 = vpack.c.b16 %v339, %v338
    %344 = vmatprep.subr.bf16.mxu0 0
    %345 = vmatpush1.bf16.msra.mxu0 %v340
    %346 = vmatprep.subr.bf16.mxu0 0
    %347 = vmatpush1.bf16.msra.mxu0 %v341
    %348 = vmatprep.subr.bf16.mxu0 0
    %349 = vmatpush1.bf16.msra.mxu0 0
    %350 = vmatprep.subr.bf16.mxu0 0
    %351 = vmatpush1.bf16.msra.mxu0 0
    %352 = vmatprep.subr.bf16.mxu0 0
    %353 = vmatpush1.bf16.msra.mxu0 0
    %354 = vmatprep.subr.bf16.mxu0 0
    %355 = vmatpush1.bf16.msra.mxu0 0
    %356 = vmatprep.subr.bf16.mxu0 0
    %357 = vmatpush1.bf16.msra.mxu0 0
    %358 = vmatprep.subr.bf16.mxu0 0
    %359 = vmatpush1.bf16.msra.mxu0 0
    %360 = vmatprep.subr.bf16.mxu0 0
    %361 = vmatpush1.bf16.msra.mxu0 0
    %362 = vmatprep.subr.bf16.mxu0 0
    %363 = vmatpush1.bf16.msra.mxu0 0
    %364 = vmatprep.subr.bf16.mxu0 0
    %365 = vmatpush1.bf16.msra.mxu0 0
    %366 = vmatprep.subr.bf16.mxu0 0
    %367 = vmatpush1.bf16.msra.mxu0 0
    %368 = vmatprep.subr.bf16.mxu0 0
    %369 = vmatpush1.bf16.msra.mxu0 0
    %370 = vmatprep.subr.bf16.mxu0 0
    %371 = vmatpush1.bf16.msra.mxu0 0
    %372 = vmatprep.subr.bf16.mxu0 0
    %373 = vmatpush1.bf16.msra.mxu0 0
    %374 = vmatprep.subr.bf16.mxu0 0
    %375 = vmatpush1.bf16.msra.mxu0 0
    %376 = vmatprep.mubr.bf16.mxu0 0
    %377 = vmatmul.mubr.bf16.gmra.mrb[0].mxu0 %v90
    %v378 = vpop.f32.mrb[0].mxu0
    %v379 = vadd.f32 0.0, %v378
    %v380 = vpop.f32.mrb[0].mxu0
    %v381 = vpop.f32.mrb[0].mxu0
    %v382 = vadd.f32 0.0, %v381
    %v383 = vpop.f32.mrb[0].mxu0
    %384 = vdwg.mxu0
    %v385 = vpack.c.bf16 %v382, %v379
    %v387 = vsel %vm158, %v385, 0
    %389 = vmatprep.subr.bf16.mxu0 0
    %390 = vmatpush1.bf16.msra.mxu0 %v150
    %391 = vmatprep.subr.bf16.mxu0 0
    %392 = vmatpush1.bf16.msra.mxu0 %v151
    %393 = vmatprep.subr.bf16.mxu0 0
    %394 = vmatpush1.bf16.msra.mxu0 %v152
    %395 = vmatprep.subr.bf16.mxu0 0
    %396 = vmatpush1.bf16.msra.mxu0 %v153
    %397 = vmatprep.subr.bf16.mxu0 0
    %398 = vmatpush1.bf16.msra.mxu0 0
    %399 = vmatprep.subr.bf16.mxu0 0
    %400 = vmatpush1.bf16.msra.mxu0 0
    %401 = vmatprep.subr.bf16.mxu0 0
    %402 = vmatpush1.bf16.msra.mxu0 0
    %403 = vmatprep.subr.bf16.mxu0 0
    %404 = vmatpush1.bf16.msra.mxu0 0
    %405 = vmatprep.subr.bf16.mxu0 0
    %406 = vmatpush1.bf16.msra.mxu0 0
    %407 = vmatprep.subr.bf16.mxu0 0
    %408 = vmatpush1.bf16.msra.mxu0 0
    %409 = vmatprep.subr.bf16.mxu0 0
    %410 = vmatpush1.bf16.msra.mxu0 0
    %411 = vmatprep.subr.bf16.mxu0 0
    %412 = vmatpush1.bf16.msra.mxu0 0
    %413 = vmatprep.subr.bf16.mxu0 0
    %414 = vmatpush1.bf16.msra.mxu0 0
    %415 = vmatprep.subr.bf16.mxu0 0
    %416 = vmatpush1.bf16.msra.mxu0 0
    %417 = vmatprep.subr.bf16.mxu0 0
    %418 = vmatpush1.bf16.msra.mxu0 0
    %419 = vmatprep.subr.bf16.mxu0 0
    %420 = vmatpush1.bf16.msra.mxu0 0
    %421 = vmatprep.mubr.bf16.mxu0 0
    %422 = vmatmul.mubr.bf16.gmra.mrb[0].mxu0 %v387
    %v423 = vpop.f32.mrb[0].mxu0
    %v424 = vadd.f32 0.0, %v423
    %v425 = vpop.f32.mrb[0].mxu0
    %v426 = vpop.f32.mrb[0].mxu0
    %v427 = vadd.f32 0.0, %v426
    %v428 = vpop.f32.mrb[0].mxu0
    %429 = vdwg.mxu0
    %v430 = vpack.c.bf16 %v427, %v424
    %v432 = vunpack.c.l.b16 %v430
    %v433 = vunpack.c.h.b16 %v430
    %v434 = vpack.c.b16 %v432, %v432
    %v435 = vpack.c.b16 %v433, %v433
    %s438 = scalar_lea.vmem [#allocation8], 16
    %439 = vst [vmem:[%s438] sm:$0xf] %v434
    %440 = vst [vmem:[%s438 + $0x4] sm:$0xf] %v435
    // Predicated region
    $region26: #{tpu_custom_call.1} parent=1 // pred_check
      _
    $region27: #{tpu_custom_call.1} parent=1 // pred_check_branch
      %442 = sbr.rel (0) target = $region29
    $region28: #{tpu_custom_call.1} parent=1 // pred_region
      %s444 = ssub.s32 384, 384
      %445 = vsyncadd [#allocation4], %s444
      %s446 = sshll.u32 [#allocation8], 4
      %s447 = int_to_ptr.vmem [resolvable:$true] %s446
      %452 = dma.vmem_to_hbm [thread:$0]  %s447, 384, %s3, [#allocation4], 64, 64, 4
    $region29: #{tpu_custom_call.1} parent=1 // pred_fallthru
      _
    // Predicated region
    $region30: #{tpu_custom_call.1} parent=1 // pred_check
      _
    $region31: #{tpu_custom_call.1} parent=1 // pred_check_branch
      %454 = sbr.rel (0) target = $region33
    $region32: #{tpu_custom_call.1} parent=1 // pred_region
      %455 = dma.done [#allocation4], 384
    $region33: #{tpu_custom_call.1} parent=1 // pred_fallthru
      _
    %456 = vsyncpa [#allocation3], 1
    %457 = vsyncpa [#allocation6], 1
    %458 = vsyncpa [#allocation4], 1

</llo_original>
